<compile_context>
chip_gen: v5e
topology: v5e:2x2
jax: 0.10.0
libtpu: 0.0.40
codegen_flags: <defaults>
</compile_context>

<pallas_src>
import functools

import jax
import jax.numpy as jnp
from jax.experimental import pallas as pl
from jax.experimental.pallas import tpu as pltpu

IN_SIZE = 2
OUT_SIZE = 1
HIDDEN = (3, 9, 9, 3)
SIZES = (IN_SIZE, *HIDDEN, OUT_SIZE)
LAYER_DIMS = tuple((SIZES[i + 1], SIZES[i]) for i in range(len(SIZES) - 1))  # (out, in)
NUM_LAYERS = len(LAYER_DIMS)
PAD = 16           # padded (out, in + bias column) extent of each packed layer block
MAX_B_TILE = 512   # upper bound on batch lanes per grid step
LANE = 128         # TPU lane width


def _net_kernel(res_ref, slab_ref, x_ref, o_ref):
    """res_ref: (1,) f32 in SMEM; slab_ref: (NUM_LAYERS, PAD, PAD) packed params;
    x_ref: (IN_SIZE, b_tile); o_ref: (OUT_SIZE, b_tile). Batch on lanes."""
    res = res_ref[0]                    # scalar residual x[0,0], read from SMEM
    h = x_ref[...]                      # (IN_SIZE, b_tile) float32

    for l, (out_d, in_d) in enumerate(LAYER_DIMS):
        w = slab_ref[l, :out_d, :in_d]            # (out_d, in_d)
        b = slab_ref[l, :out_d, in_d:in_d + 1]    # (out_d, 1)
        # VPU broadcast-FMA; dims are far too small for the MXU to pay off.
        acc = b
        for i in range(in_d):                     # unrolled at trace time
            acc = acc + w[:, i:i + 1] * h[i:i + 1, :]   # (out_d, b_tile)
        h = jax.nn.sigmoid(acc) if l < NUM_LAYERS - 1 else acc

    o_ref[...] = (h + res).astype(o_ref.dtype)    # (1, b_tile), lane-dense store


def pack_params(params):
    """Pack [(W (out,in), b (out,))] into one (NUM_LAYERS, PAD, PAD) f32 slab:
    slab[l, :out, :in] = W_l ; slab[l, :out, in] = b_l."""
    slab = jnp.zeros((NUM_LAYERS, PAD, PAD), jnp.float32)
    for l, (w, b) in enumerate(params):
        out_d, in_d = w.shape
        slab = slab.at[l, :out_d, :in_d].set(w.astype(jnp.float32))
        slab = slab.at[l, :out_d, in_d].set(b.astype(jnp.float32))
    return slab


@functools.partial(jax.jit, static_argnames=("b_tile", "num_tiles"))
def _net_forward_padded(x_fm, slab, res, *, b_tile, num_tiles):
    """x_fm: (IN_SIZE, num_tiles*b_tile) lane-major, zero-padded batch."""
    b_pad = num_tiles * b_tile
    return pl.pallas_call(
        _net_kernel,
        out_shape=jax.ShapeDtypeStruct((OUT_SIZE, b_pad), jnp.float32),
        grid=(num_tiles,),
        in_specs=[
            pl.BlockSpec(memory_space=pltpu.MemorySpace.SMEM),          # res scalar
            pl.BlockSpec((NUM_LAYERS, PAD, PAD), lambda i: (0, 0, 0)),  # slab (resident)
            pl.BlockSpec((IN_SIZE, b_tile), lambda i: (0, i)),          # x tile
        ],
        out_specs=pl.BlockSpec((OUT_SIZE, b_tile), lambda i: (0, i)),
        compiler_params=pltpu.CompilerParams(
            dimension_semantics=("parallel",)),
    )(res, slab, x_fm)


def net_forward(x, params):
    """x: (B, IN_SIZE) float32; params: list of (W (out,in), b (out,)) as in nn.Linear."""
    B = x.shape[0]
    # Lane-tile: round B up to the 128-lane granule, capped at MAX_B_TILE.
    b_tile = min(MAX_B_TILE, max(LANE, pl.cdiv(B, LANE) * LANE))
    num_tiles = pl.cdiv(B, b_tile)
    B_pad = num_tiles * b_tile

    # Lane-major activations: batch on the 128-wide lane axis, zero-padded.
    x_fm = jnp.zeros((IN_SIZE, B_pad), jnp.float32).at[:, :B].set(
        x.astype(jnp.float32).T)
    slab = pack_params(params)                          # single parameter operand
    res = x[0, 0].astype(jnp.float32).reshape((1,))     # scalar residual -> SMEM

    out_fm = _net_forward_padded(x_fm, slab, res, b_tile=b_tile,
                                 num_tiles=num_tiles)
    return out_fm[:, :B].T                              # (B, OUT_SIZE)


def init_params(key):
    """PyTorch nn.Linear-style init: W (out,in), b (out,), U(+-1/sqrt(fan_in))."""
    params = []
    for i in range(len(SIZES) - 1):
        fan_in, fan_out = SIZES[i], SIZES[i + 1]
        key, kw, kb = jax.random.split(key, 3)
        bound = 1.0 / jnp.sqrt(fan_in)
        w = jax.random.uniform(kw, (fan_out, fan_in), jnp.float32, -bound, bound)
        b = jax.random.uniform(kb, (fan_out,), jnp.float32, -bound, bound)
        params.append((w, b))
    return params


def reference_forward(x, params):
    res = x[0, 0]
    h = x
    for i, (w, b) in enumerate(params):
        h = h @ w.T + b
        if i < len(params) - 1:
            h = jax.nn.sigmoid(h)
    return h + res


if __name__ == "__main__":
    key = jax.random.PRNGKey(0)
    kx, kp = jax.random.split(key)

    B = 8  # small demo batch; kernel pads to one 128-wide lane tile
    x = jax.random.normal(kx, (B, IN_SIZE), jnp.float32)
    params = init_params(kp)

    out = net_forward(x, params)
    out = jax.block_until_ready(out)

    ref = reference_forward(x, params)
    assert out.shape == (B, OUT_SIZE), out.shape
    assert jnp.allclose(out, ref, atol=1e-5, rtol=1e-5), (out, ref)

    print("KERNEL_OK")
</pallas_src>

<mosaic_0001>
module attributes {stable_mosaic.version = 11 : i64} {
  func.func @_net_kernel(%arg0: i32, %arg1: memref<1xf32, #tpu.memory_space<smem>>, %arg2: memref<5x16x16xf32, #tpu.memory_space<vmem>>, %arg3: memref<2x128xf32, #tpu.memory_space<vmem>>, %arg4: memref<1x128xf32, #tpu.memory_space<vmem>>) attributes {dimension_semantics = [#tpu.dimension_semantics<parallel>], iteration_bounds = array<i64: 1>, scalar_prefetch = 0 : i64, scratch_operands = 0 : i64, tpu.core_type = #tpu.core_type<tc>, window_params = [{transform_indices = @transform_0, window_bounds = array<i64: 1>}, {pipeline_mode = #tpu.pipeline_mode<synchronous>, transform_indices = @transform_1, window_bounds = array<i64: 5, 16, 16>}, {transform_indices = @transform_2, window_bounds = array<i64: 2, 128>}, {transform_indices = @transform_3, window_bounds = array<i64: 1, 128>}]} {
    %c0 = arith.constant 0 : index
    %0 = memref.load %arg1[%c0] : memref<1xf32, #tpu.memory_space<smem>>
    %c0_0 = arith.constant 0 : index
    %c0_1 = arith.constant 0 : index
    %1 = vector.load %arg3[%c0_0, %c0_1] : memref<2x128xf32, #tpu.memory_space<vmem>>, vector<2x128xf32>
    %c0_2 = arith.constant 0 : index
    %c0_3 = arith.constant 0 : index
    %c0_4 = arith.constant 0 : index
    %2 = vector.load %arg2[%c0_2, %c0_3, %c0_4] : memref<5x16x16xf32, #tpu.memory_space<vmem>>, vector<1x3x2xf32>
    %3 = vector.shape_cast %2 : vector<1x3x2xf32> to vector<3x2xf32>
    %c0_5 = arith.constant 0 : index
    %c0_6 = arith.constant 0 : index
    %c2 = arith.constant 2 : index
    %4 = vector.load %arg2[%c0_5, %c0_6, %c2] : memref<5x16x16xf32, #tpu.memory_space<vmem>>, vector<1x3x1xf32>
    %5 = vector.shape_cast %4 : vector<1x3x1xf32> to vector<3x1xf32>
    %6 = vector.extract_strided_slice %3 {offsets = [0, 0], sizes = [3, 1], strides = [1, 1]} : vector<3x2xf32> to vector<3x1xf32>
    %7 = vector.extract_strided_slice %1 {offsets = [0, 0], sizes = [1, 128], strides = [1, 1]} : vector<2x128xf32> to vector<1x128xf32>
    %8 = vector.broadcast %6 : vector<3x1xf32> to vector<3x128xf32>
    %9 = vector.broadcast %7 : vector<1x128xf32> to vector<3x128xf32>
    %10 = arith.mulf %8, %9 : vector<3x128xf32>
    %11 = vector.broadcast %5 : vector<3x1xf32> to vector<3x128xf32>
    %12 = arith.addf %11, %10 : vector<3x128xf32>
    %13 = vector.extract_strided_slice %3 {offsets = [0, 1], sizes = [3, 1], strides = [1, 1]} : vector<3x2xf32> to vector<3x1xf32>
    %14 = vector.extract_strided_slice %1 {offsets = [1, 0], sizes = [1, 128], strides = [1, 1]} : vector<2x128xf32> to vector<1x128xf32>
    %15 = vector.broadcast %13 : vector<3x1xf32> to vector<3x128xf32>
    %16 = vector.broadcast %14 : vector<1x128xf32> to vector<3x128xf32>
    %17 = arith.mulf %15, %16 : vector<3x128xf32>
    %18 = arith.addf %12, %17 : vector<3x128xf32>
    %19 = arith.negf %18 : vector<3x128xf32>
    %20 = math.exp %19 : vector<3x128xf32>
    %cst = arith.constant 1.000000e+00 : f32
    %21 = vector.broadcast %cst : f32 to vector<3x128xf32>
    %22 = arith.addf %21, %20 : vector<3x128xf32>
    %23 = arith.divf %21, %22 : vector<3x128xf32>
    %c1 = arith.constant 1 : index
    %c0_7 = arith.constant 0 : index
    %c0_8 = arith.constant 0 : index
    %24 = vector.load %arg2[%c1, %c0_7, %c0_8] : memref<5x16x16xf32, #tpu.memory_space<vmem>>, vector<1x9x3xf32>
    %25 = vector.shape_cast %24 : vector<1x9x3xf32> to vector<9x3xf32>
    %c1_9 = arith.constant 1 : index
    %c0_10 = arith.constant 0 : index
    %c3 = arith.constant 3 : index
    %26 = vector.load %arg2[%c1_9, %c0_10, %c3] : memref<5x16x16xf32, #tpu.memory_space<vmem>>, vector<1x9x1xf32>
    %27 = vector.shape_cast %26 : vector<1x9x1xf32> to vector<9x1xf32>
    %28 = vector.extract_strided_slice %25 {offsets = [0, 0], sizes = [9, 1], strides = [1, 1]} : vector<9x3xf32> to vector<9x1xf32>
    %29 = vector.extract_strided_slice %23 {offsets = [0, 0], sizes = [1, 128], strides = [1, 1]} : vector<3x128xf32> to vector<1x128xf32>
    %30 = vector.broadcast %28 : vector<9x1xf32> to vector<9x128xf32>
    %31 = vector.broadcast %29 : vector<1x128xf32> to vector<9x128xf32>
    %32 = arith.mulf %30, %31 : vector<9x128xf32>
    %33 = vector.broadcast %27 : vector<9x1xf32> to vector<9x128xf32>
    %34 = arith.addf %33, %32 : vector<9x128xf32>
    %35 = vector.extract_strided_slice %25 {offsets = [0, 1], sizes = [9, 1], strides = [1, 1]} : vector<9x3xf32> to vector<9x1xf32>
    %36 = vector.extract_strided_slice %23 {offsets = [1, 0], sizes = [1, 128], strides = [1, 1]} : vector<3x128xf32> to vector<1x128xf32>
    %37 = vector.broadcast %35 : vector<9x1xf32> to vector<9x128xf32>
    %38 = vector.broadcast %36 : vector<1x128xf32> to vector<9x128xf32>
    %39 = arith.mulf %37, %38 : vector<9x128xf32>
    %40 = arith.addf %34, %39 : vector<9x128xf32>
    %41 = vector.extract_strided_slice %25 {offsets = [0, 2], sizes = [9, 1], strides = [1, 1]} : vector<9x3xf32> to vector<9x1xf32>
    %42 = vector.extract_strided_slice %23 {offsets = [2, 0], sizes = [1, 128], strides = [1, 1]} : vector<3x128xf32> to vector<1x128xf32>
    %43 = vector.broadcast %41 : vector<9x1xf32> to vector<9x128xf32>
    %44 = vector.broadcast %42 : vector<1x128xf32> to vector<9x128xf32>
    %45 = arith.mulf %43, %44 : vector<9x128xf32>
    %46 = arith.addf %40, %45 : vector<9x128xf32>
    %47 = arith.negf %46 : vector<9x128xf32>
    %48 = math.exp %47 : vector<9x128xf32>
    %cst_11 = arith.constant 1.000000e+00 : f32
    %49 = vector.broadcast %cst_11 : f32 to vector<9x128xf32>
    %50 = arith.addf %49, %48 : vector<9x128xf32>
    %51 = arith.divf %49, %50 : vector<9x128xf32>
    %c2_12 = arith.constant 2 : index
    %c0_13 = arith.constant 0 : index
    %c0_14 = arith.constant 0 : index
    %52 = vector.load %arg2[%c2_12, %c0_13, %c0_14] : memref<5x16x16xf32, #tpu.memory_space<vmem>>, vector<1x9x9xf32>
    %53 = vector.shape_cast %52 : vector<1x9x9xf32> to vector<9x9xf32>
    %c2_15 = arith.constant 2 : index
    %c0_16 = arith.constant 0 : index
    %c9 = arith.constant 9 : index
    %54 = vector.load %arg2[%c2_15, %c0_16, %c9] : memref<5x16x16xf32, #tpu.memory_space<vmem>>, vector<1x9x1xf32>
    %55 = vector.shape_cast %54 : vector<1x9x1xf32> to vector<9x1xf32>
    %56 = vector.extract_strided_slice %53 {offsets = [0, 0], sizes = [9, 1], strides = [1, 1]} : vector<9x9xf32> to vector<9x1xf32>
    %57 = vector.extract_strided_slice %51 {offsets = [0, 0], sizes = [1, 128], strides = [1, 1]} : vector<9x128xf32> to vector<1x128xf32>
    %58 = vector.broadcast %56 : vector<9x1xf32> to vector<9x128xf32>
    %59 = vector.broadcast %57 : vector<1x128xf32> to vector<9x128xf32>
    %60 = arith.mulf %58, %59 : vector<9x128xf32>
    %61 = vector.broadcast %55 : vector<9x1xf32> to vector<9x128xf32>
    %62 = arith.addf %61, %60 : vector<9x128xf32>
    %63 = vector.extract_strided_slice %53 {offsets = [0, 1], sizes = [9, 1], strides = [1, 1]} : vector<9x9xf32> to vector<9x1xf32>
    %64 = vector.extract_strided_slice %51 {offsets = [1, 0], sizes = [1, 128], strides = [1, 1]} : vector<9x128xf32> to vector<1x128xf32>
    %65 = vector.broadcast %63 : vector<9x1xf32> to vector<9x128xf32>
    %66 = vector.broadcast %64 : vector<1x128xf32> to vector<9x128xf32>
    %67 = arith.mulf %65, %66 : vector<9x128xf32>
    %68 = arith.addf %62, %67 : vector<9x128xf32>
    %69 = vector.extract_strided_slice %53 {offsets = [0, 2], sizes = [9, 1], strides = [1, 1]} : vector<9x9xf32> to vector<9x1xf32>
    %70 = vector.extract_strided_slice %51 {offsets = [2, 0], sizes = [1, 128], strides = [1, 1]} : vector<9x128xf32> to vector<1x128xf32>
    %71 = vector.broadcast %69 : vector<9x1xf32> to vector<9x128xf32>
    %72 = vector.broadcast %70 : vector<1x128xf32> to vector<9x128xf32>
    %73 = arith.mulf %71, %72 : vector<9x128xf32>
    %74 = arith.addf %68, %73 : vector<9x128xf32>
    %75 = vector.extract_strided_slice %53 {offsets = [0, 3], sizes = [9, 1], strides = [1, 1]} : vector<9x9xf32> to vector<9x1xf32>
    %76 = vector.extract_strided_slice %51 {offsets = [3, 0], sizes = [1, 128], strides = [1, 1]} : vector<9x128xf32> to vector<1x128xf32>
    %77 = vector.broadcast %75 : vector<9x1xf32> to vector<9x128xf32>
    %78 = vector.broadcast %76 : vector<1x128xf32> to vector<9x128xf32>
    %79 = arith.mulf %77, %78 : vector<9x128xf32>
    %80 = arith.addf %74, %79 : vector<9x128xf32>
    %81 = vector.extract_strided_slice %53 {offsets = [0, 4], sizes = [9, 1], strides = [1, 1]} : vector<9x9xf32> to vector<9x1xf32>
    %82 = vector.extract_strided_slice %51 {offsets = [4, 0], sizes = [1, 128], strides = [1, 1]} : vector<9x128xf32> to vector<1x128xf32>
    %83 = vector.broadcast %81 : vector<9x1xf32> to vector<9x128xf32>
    %84 = vector.broadcast %82 : vector<1x128xf32> to vector<9x128xf32>
    %85 = arith.mulf %83, %84 : vector<9x128xf32>
    %86 = arith.addf %80, %85 : vector<9x128xf32>
    %87 = vector.extract_strided_slice %53 {offsets = [0, 5], sizes = [9, 1], strides = [1, 1]} : vector<9x9xf32> to vector<9x1xf32>
    %88 = vector.extract_strided_slice %51 {offsets = [5, 0], sizes = [1, 128], strides = [1, 1]} : vector<9x128xf32> to vector<1x128xf32>
    %89 = vector.broadcast %87 : vector<9x1xf32> to vector<9x128xf32>
    %90 = vector.broadcast %88 : vector<1x128xf32> to vector<9x128xf32>
    %91 = arith.mulf %89, %90 : vector<9x128xf32>
    %92 = arith.addf %86, %91 : vector<9x128xf32>
    %93 = vector.extract_strided_slice %53 {offsets = [0, 6], sizes = [9, 1], strides = [1, 1]} : vector<9x9xf32> to vector<9x1xf32>
    %94 = vector.extract_strided_slice %51 {offsets = [6, 0], sizes = [1, 128], strides = [1, 1]} : vector<9x128xf32> to vector<1x128xf32>
    %95 = vector.broadcast %93 : vector<9x1xf32> to vector<9x128xf32>
    %96 = vector.broadcast %94 : vector<1x128xf32> to vector<9x128xf32>
    %97 = arith.mulf %95, %96 : vector<9x128xf32>
    %98 = arith.addf %92, %97 : vector<9x128xf32>
    %99 = vector.extract_strided_slice %53 {offsets = [0, 7], sizes = [9, 1], strides = [1, 1]} : vector<9x9xf32> to vector<9x1xf32>
    %100 = vector.extract_strided_slice %51 {offsets = [7, 0], sizes = [1, 128], strides = [1, 1]} : vector<9x128xf32> to vector<1x128xf32>
    %101 = vector.broadcast %99 : vector<9x1xf32> to vector<9x128xf32>
    %102 = vector.broadcast %100 : vector<1x128xf32> to vector<9x128xf32>
    %103 = arith.mulf %101, %102 : vector<9x128xf32>
    %104 = arith.addf %98, %103 : vector<9x128xf32>
    %105 = vector.extract_strided_slice %53 {offsets = [0, 8], sizes = [9, 1], strides = [1, 1]} : vector<9x9xf32> to vector<9x1xf32>
    %106 = vector.extract_strided_slice %51 {offsets = [8, 0], sizes = [1, 128], strides = [1, 1]} : vector<9x128xf32> to vector<1x128xf32>
    %107 = vector.broadcast %105 : vector<9x1xf32> to vector<9x128xf32>
    %108 = vector.broadcast %106 : vector<1x128xf32> to vector<9x128xf32>
    %109 = arith.mulf %107, %108 : vector<9x128xf32>
    %110 = arith.addf %104, %109 : vector<9x128xf32>
    %111 = arith.negf %110 : vector<9x128xf32>
    %112 = math.exp %111 : vector<9x128xf32>
    %cst_17 = arith.constant 1.000000e+00 : f32
    %113 = vector.broadcast %cst_17 : f32 to vector<9x128xf32>
    %114 = arith.addf %113, %112 : vector<9x128xf32>
    %115 = arith.divf %113, %114 : vector<9x128xf32>
    %c3_18 = arith.constant 3 : index
    %c0_19 = arith.constant 0 : index
    %c0_20 = arith.constant 0 : index
    %116 = vector.load %arg2[%c3_18, %c0_19, %c0_20] : memref<5x16x16xf32, #tpu.memory_space<vmem>>, vector<1x3x9xf32>
    %117 = vector.shape_cast %116 : vector<1x3x9xf32> to vector<3x9xf32>
    %c3_21 = arith.constant 3 : index
    %c0_22 = arith.constant 0 : index
    %c9_23 = arith.constant 9 : index
    %118 = vector.load %arg2[%c3_21, %c0_22, %c9_23] : memref<5x16x16xf32, #tpu.memory_space<vmem>>, vector<1x3x1xf32>
    %119 = vector.shape_cast %118 : vector<1x3x1xf32> to vector<3x1xf32>
    %120 = vector.extract_strided_slice %117 {offsets = [0, 0], sizes = [3, 1], strides = [1, 1]} : vector<3x9xf32> to vector<3x1xf32>
    %121 = vector.extract_strided_slice %115 {offsets = [0, 0], sizes = [1, 128], strides = [1, 1]} : vector<9x128xf32> to vector<1x128xf32>
    %122 = vector.broadcast %120 : vector<3x1xf32> to vector<3x128xf32>
    %123 = vector.broadcast %121 : vector<1x128xf32> to vector<3x128xf32>
    %124 = arith.mulf %122, %123 : vector<3x128xf32>
    %125 = vector.broadcast %119 : vector<3x1xf32> to vector<3x128xf32>
    %126 = arith.addf %125, %124 : vector<3x128xf32>
    %127 = vector.extract_strided_slice %117 {offsets = [0, 1], sizes = [3, 1], strides = [1, 1]} : vector<3x9xf32> to vector<3x1xf32>
    %128 = vector.extract_strided_slice %115 {offsets = [1, 0], sizes = [1, 128], strides = [1, 1]} : vector<9x128xf32> to vector<1x128xf32>
    %129 = vector.broadcast %127 : vector<3x1xf32> to vector<3x128xf32>
    %130 = vector.broadcast %128 : vector<1x128xf32> to vector<3x128xf32>
    %131 = arith.mulf %129, %130 : vector<3x128xf32>
    %132 = arith.addf %126, %131 : vector<3x128xf32>
    %133 = vector.extract_strided_slice %117 {offsets = [0, 2], sizes = [3, 1], strides = [1, 1]} : vector<3x9xf32> to vector<3x1xf32>
    %134 = vector.extract_strided_slice %115 {offsets = [2, 0], sizes = [1, 128], strides = [1, 1]} : vector<9x128xf32> to vector<1x128xf32>
    %135 = vector.broadcast %133 : vector<3x1xf32> to vector<3x128xf32>
    %136 = vector.broadcast %134 : vector<1x128xf32> to vector<3x128xf32>
    %137 = arith.mulf %135, %136 : vector<3x128xf32>
    %138 = arith.addf %132, %137 : vector<3x128xf32>
    %139 = vector.extract_strided_slice %117 {offsets = [0, 3], sizes = [3, 1], strides = [1, 1]} : vector<3x9xf32> to vector<3x1xf32>
    %140 = vector.extract_strided_slice %115 {offsets = [3, 0], sizes = [1, 128], strides = [1, 1]} : vector<9x128xf32> to vector<1x128xf32>
    %141 = vector.broadcast %139 : vector<3x1xf32> to vector<3x128xf32>
    %142 = vector.broadcast %140 : vector<1x128xf32> to vector<3x128xf32>
    %143 = arith.mulf %141, %142 : vector<3x128xf32>
    %144 = arith.addf %138, %143 : vector<3x128xf32>
    %145 = vector.extract_strided_slice %117 {offsets = [0, 4], sizes = [3, 1], strides = [1, 1]} : vector<3x9xf32> to vector<3x1xf32>
    %146 = vector.extract_strided_slice %115 {offsets = [4, 0], sizes = [1, 128], strides = [1, 1]} : vector<9x128xf32> to vector<1x128xf32>
    %147 = vector.broadcast %145 : vector<3x1xf32> to vector<3x128xf32>
    %148 = vector.broadcast %146 : vector<1x128xf32> to vector<3x128xf32>
    %149 = arith.mulf %147, %148 : vector<3x128xf32>
    %150 = arith.addf %144, %149 : vector<3x128xf32>
    %151 = vector.extract_strided_slice %117 {offsets = [0, 5], sizes = [3, 1], strides = [1, 1]} : vector<3x9xf32> to vector<3x1xf32>
    %152 = vector.extract_strided_slice %115 {offsets = [5, 0], sizes = [1, 128], strides = [1, 1]} : vector<9x128xf32> to vector<1x128xf32>
    %153 = vector.broadcast %151 : vector<3x1xf32> to vector<3x128xf32>
    %154 = vector.broadcast %152 : vector<1x128xf32> to vector<3x128xf32>
    %155 = arith.mulf %153, %154 : vector<3x128xf32>
    %156 = arith.addf %150, %155 : vector<3x128xf32>
    %157 = vector.extract_strided_slice %117 {offsets = [0, 6], sizes = [3, 1], strides = [1, 1]} : vector<3x9xf32> to vector<3x1xf32>
    %158 = vector.extract_strided_slice %115 {offsets = [6, 0], sizes = [1, 128], strides = [1, 1]} : vector<9x128xf32> to vector<1x128xf32>
    %159 = vector.broadcast %157 : vector<3x1xf32> to vector<3x128xf32>
    %160 = vector.broadcast %158 : vector<1x128xf32> to vector<3x128xf32>
    %161 = arith.mulf %159, %160 : vector<3x128xf32>
    %162 = arith.addf %156, %161 : vector<3x128xf32>
    %163 = vector.extract_strided_slice %117 {offsets = [0, 7], sizes = [3, 1], strides = [1, 1]} : vector<3x9xf32> to vector<3x1xf32>
    %164 = vector.extract_strided_slice %115 {offsets = [7, 0], sizes = [1, 128], strides = [1, 1]} : vector<9x128xf32> to vector<1x128xf32>
    %165 = vector.broadcast %163 : vector<3x1xf32> to vector<3x128xf32>
    %166 = vector.broadcast %164 : vector<1x128xf32> to vector<3x128xf32>
    %167 = arith.mulf %165, %166 : vector<3x128xf32>
    %168 = arith.addf %162, %167 : vector<3x128xf32>
    %169 = vector.extract_strided_slice %117 {offsets = [0, 8], sizes = [3, 1], strides = [1, 1]} : vector<3x9xf32> to vector<3x1xf32>
    %170 = vector.extract_strided_slice %115 {offsets = [8, 0], sizes = [1, 128], strides = [1, 1]} : vector<9x128xf32> to vector<1x128xf32>
    %171 = vector.broadcast %169 : vector<3x1xf32> to vector<3x128xf32>
    %172 = vector.broadcast %170 : vector<1x128xf32> to vector<3x128xf32>
    %173 = arith.mulf %171, %172 : vector<3x128xf32>
    %174 = arith.addf %168, %173 : vector<3x128xf32>
    %175 = arith.negf %174 : vector<3x128xf32>
    %176 = math.exp %175 : vector<3x128xf32>
    %cst_24 = arith.constant 1.000000e+00 : f32
    %177 = vector.broadcast %cst_24 : f32 to vector<3x128xf32>
    %178 = arith.addf %177, %176 : vector<3x128xf32>
    %179 = arith.divf %177, %178 : vector<3x128xf32>
    %c4 = arith.constant 4 : index
    %c0_25 = arith.constant 0 : index
    %c0_26 = arith.constant 0 : index
    %180 = vector.load %arg2[%c4, %c0_25, %c0_26] : memref<5x16x16xf32, #tpu.memory_space<vmem>>, vector<1x1x3xf32>
    %181 = vector.shape_cast %180 : vector<1x1x3xf32> to vector<1x3xf32>
    %c4_27 = arith.constant 4 : index
    %c0_28 = arith.constant 0 : index
    %c3_29 = arith.constant 3 : index
    %182 = vector.load %arg2[%c4_27, %c0_28, %c3_29] : memref<5x16x16xf32, #tpu.memory_space<vmem>>, vector<1x1x1xf32>
    %183 = vector.shape_cast %182 : vector<1x1x1xf32> to vector<1x1xf32>
    %184 = vector.extract_strided_slice %181 {offsets = [0, 0], sizes = [1, 1], strides = [1, 1]} : vector<1x3xf32> to vector<1x1xf32>
    %185 = vector.extract_strided_slice %179 {offsets = [0, 0], sizes = [1, 128], strides = [1, 1]} : vector<3x128xf32> to vector<1x128xf32>
    %186 = vector.broadcast %184 : vector<1x1xf32> to vector<1x128xf32>
    %187 = arith.mulf %186, %185 : vector<1x128xf32>
    %188 = vector.broadcast %183 : vector<1x1xf32> to vector<1x128xf32>
    %189 = arith.addf %188, %187 : vector<1x128xf32>
    %190 = vector.extract_strided_slice %181 {offsets = [0, 1], sizes = [1, 1], strides = [1, 1]} : vector<1x3xf32> to vector<1x1xf32>
    %191 = vector.extract_strided_slice %179 {offsets = [1, 0], sizes = [1, 128], strides = [1, 1]} : vector<3x128xf32> to vector<1x128xf32>
    %192 = vector.broadcast %190 : vector<1x1xf32> to vector<1x128xf32>
    %193 = arith.mulf %192, %191 : vector<1x128xf32>
    %194 = arith.addf %189, %193 : vector<1x128xf32>
    %195 = vector.extract_strided_slice %181 {offsets = [0, 2], sizes = [1, 1], strides = [1, 1]} : vector<1x3xf32> to vector<1x1xf32>
    %196 = vector.extract_strided_slice %179 {offsets = [2, 0], sizes = [1, 128], strides = [1, 1]} : vector<3x128xf32> to vector<1x128xf32>
    %197 = vector.broadcast %195 : vector<1x1xf32> to vector<1x128xf32>
    %198 = arith.mulf %197, %196 : vector<1x128xf32>
    %199 = arith.addf %194, %198 : vector<1x128xf32>
    %200 = vector.broadcast %0 : f32 to vector<1x128xf32>
    %201 = arith.addf %199, %200 : vector<1x128xf32>
    %c0_30 = arith.constant 0 : index
    %c0_31 = arith.constant 0 : index
    %202 = vector.load %arg4[%c0_30, %c0_31] : memref<1x128xf32, #tpu.memory_space<vmem>>, vector<1x128xf32>
    tpu.vector_store %arg4[%c0_30, %c0_31], %201 {strides = array<i32>} : memref<1x128xf32, #tpu.memory_space<vmem>>, vector<1x128xf32>,
    return
  }
  func.func @transform_0(%arg0: i32) -> i32 {
    %c0_i32 = arith.constant 0 : i32
    %c0_i32_0 = arith.constant 0 : i32
    return %c0_i32 : i32
  }
  func.func @transform_1(%arg0: i32) -> (i32, i32, i32) {
    %c0_i32 = arith.constant 0 : i32
    %c0_i32_0 = arith.constant 0 : i32
    %c0_i32_1 = arith.constant 0 : i32
    %c0_i32_2 = arith.constant 0 : i32
    return %c0_i32, %c0_i32_0, %c0_i32_1 : i32, i32, i32
  }
  func.func @transform_2(%arg0: i32) -> (i32, i32) {
    %c0_i32 = arith.constant 0 : i32
    %c0_i32_0 = arith.constant 0 : i32
    return %c0_i32, %arg0 : i32, i32
  }
  func.func @transform_3(%arg0: i32) -> (i32, i32) {
    %c0_i32 = arith.constant 0 : i32
    %c0_i32_0 = arith.constant 0 : i32
    return %c0_i32, %arg0 : i32, i32
  }
}

</mosaic_0001>

<llo_original>
// kernel: _net_forward_padded.1
$region0: #{_net_forward_padded.1}
  #allocation0 [shape = 'u32[]', space=smem, size = 0x4, offset = 0x4, fixed_abs, tag = 'smem constant byte address 0x4 - core index']
  #allocation1 [shape = 'u32[72,128]{1,0:T(1,128)}', space=vmem, size = 0x9000, scoped, tag = 'internal scratch']
  #allocation2 [shape = 'f32[1]{0:T(128)S(6)}', space=smem, size = 0x200, scoped, tag = 'scoped memory for _net_forward_padded.1']
  %s0 = inlined_call_operand.<no memory space> [shape: f32[1], index: 0, kind: input, shape index: {}]
  %s1 = inlined_call_operand.hbm [shape: f32[5,16,16], index: 1, kind: input, shape index: {}]
  %s2 = inlined_call_operand.vmem [shape: f32[2,128], index: 2, kind: input, shape index: {}]
  %s3 = inlined_call_operand.hbm [shape: f32[1,128], index: 3, kind: output, shape index: {}]
  %s4 = sld [smem:[#allocation0]]
  $region26: #{_net_forward_padded.1} parent=0
    _
  %s6 = ssub.s32 1, %s4
  %s7 = scalar_select 0, %s6, %s4
  %8 = sst [smem:[#allocation2]] %s0
  $region1: #{_net_forward_padded.1} parent=0
    #allocation3 [shape = 'u8[40960]{0}', space=vmem, size = 0xa000, scoped, tag = 'input window, operand 1, single buffered']
    #allocation4 [shape = 's32[1]{0}', space=sflag, size = 0x4, scoped, tag = 'scoped memory for _net_forward_padded.1']
    #allocation5 [shape = 's32[1]{0}', space=sflag, size = 0x4, scoped, tag = 'scoped memory for _net_forward_padded.1']
    #allocation6 [shape = 'u8[512]{0}', space=vmem, size = 0x400, scoped, tag = 'output window, operand 0, single buffered']
    %9 = vsyncpa [#allocation4], 0
    %10 = vsyncpa [#allocation5], 0
    // Predicated region
    $region2: #{_net_forward_padded.1} parent=1 // pred_check
      _
    $region3: #{_net_forward_padded.1} parent=1 // pred_check_branch
      %12 = sbr.rel (0) target = $region5
    $region4: #{_net_forward_padded.1} parent=1 // pred_region
      _
    $region5: #{_net_forward_padded.1} parent=1 // pred_fallthru
      _
    // Predicated region
    $region6: #{_net_forward_padded.1} parent=1 // pred_check
      _
    $region7: #{_net_forward_padded.1} parent=1 // pred_check_branch
      %14 = sbr.rel (0) target = $region9
    $region8: #{_net_forward_padded.1} parent=1 // pred_region
      %16 = vsyncadd [#allocation4], 0
      %s17 = sshll.u32 %s1, 4
      %s18 = int_to_ptr.hbm [resolvable:$true] %s17
      %s19 = sshll.u32 [#allocation3], 4
      %s20 = int_to_ptr.vmem [resolvable:$true] %s19
      %25 = dma.hbm_to_vmem [thread:$0]  %s18, 1280, %s20, [#allocation4], 128, 128, 8
    $region9: #{_net_forward_padded.1} parent=1 // pred_fallthru
      _
    // Predicated region
    $region10: #{_net_forward_padded.1} parent=1 // pred_check
      _
    $region11: #{_net_forward_padded.1} parent=1 // pred_check_branch
      %27 = sbr.rel (0) target = $region13
    $region12: #{_net_forward_padded.1} parent=1 // pred_region
      _
    $region13: #{_net_forward_padded.1} parent=1 // pred_fallthru
      _
    // Predicated region
    $region14: #{_net_forward_padded.1} parent=1 // pred_check
      _
    $region15: #{_net_forward_padded.1} parent=1 // pred_check_branch
      %29 = sbr.rel (0) target = $region17
    $region16: #{_net_forward_padded.1} parent=1 // pred_region
      %31 = dma.done [#allocation4], 1280
    $region17: #{_net_forward_padded.1} parent=1 // pred_fallthru
      _
    %s32 = sld [smem:[#allocation2]]
    %v33 = vld [vmem:[%s2] sm:$0x3]
    %v34 = vld [vmem:[#allocation3] sm:$0x7]
    %36 = vset.pattern.permute.xlu0 0
    %37 = vperm.xlu0 %36, %v34
    %v38 = vpop.permute.xlu0 %37
    %v40 = vperm.slane %v33, 0
    %v41 = vmul.f32 %v38, %v40
    %42 = vset.pattern.permute.xlu0 2
    %43 = vperm.xlu0 %42, %v34
    %v44 = vpop.permute.xlu0 %43
    %v46 = vadd.f32 %v44, %v41
    %47 = vset.pattern.permute.xlu0 1
    %48 = vperm.xlu0 %47, %v34
    %v49 = vpop.permute.xlu0 %48
    %v51 = vperm.slane %v33, 1
    %v52 = vmul.f32 %v49, %v51
    %v53 = vadd.f32 %v46, %v52
    %v54 = vxor.u32 %v53, 2147483648
    %v55 = vmul.f32 %v54, 1.442695
    %v56 = vpow.pop %v55
    %v57 = vadd.f32 %v56, 1.0
    %v58 = vrcp.pop %v57
    %v59 = vmul.f32 %v57, %v58
    %v60 = vsub.f32 1.0, %v59
    %v61 = vmul.f32 %v58, %v60
    %v62 = vadd.f32 %v58, %v61
    %vm63 = vweird.f32 %v57
    %vm64 = vweird.f32 %v58
    %vm65 = vmor %vm63, %vm64
    %v66 = vsel %vm65, %v58, %v62
    %v67 = vand.u32 2147483647, %v57
    %vm68 = vcmp.eq.f32.partialorder %v67, 8.507059e+37
    %v69 = vand.u32 %v57, 2147483648
    %v70 = vor.u32 1.1754944e-38, %v69
    %v71 = vsel %vm68, %v70, %v66
    %v72 = vmul.f32 1.0, %v71
    %s73 = scalar_lea.vmem [#allocation3], 16
    %v74 = vld [vmem:[%s73] sm:$0xff]
    %v75 = vld [vmem:[%s73 + $0x8] sm:$0x1]
    %77 = vset.pattern.permute.xlu0 0
    %78 = vperm.xlu0 %77, %v74
    %v79 = vpop.permute.xlu0 %78
    %82 = vset.pattern.permute.xlu0 0
    %83 = vperm.xlu0 %82, %v75
    %v84 = vpop.permute.xlu0 %83
    %v86 = vperm.slane %v72, 0
    %v87 = vmul.f32 %v79, %v86
    %v88 = vmul.f32 %v84, %v86
    %89 = vset.pattern.permute.xlu0 3
    %90 = vperm.xlu0 %89, %v74
    %v91 = vpop.permute.xlu0 %90
    %93 = vset.pattern.permute.xlu0 3
    %94 = vperm.xlu0 %93, %v75
    %v95 = vpop.permute.xlu0 %94
    %v97 = vadd.f32 %v91, %v87
    %v98 = vadd.f32 %v95, %v88
    %99 = vset.pattern.permute.xlu0 1
    %100 = vperm.xlu0 %99, %v74
    %v101 = vpop.permute.xlu0 %100
    %103 = vset.pattern.permute.xlu0 1
    %104 = vperm.xlu0 %103, %v75
    %v105 = vpop.permute.xlu0 %104
    %v107 = vperm.slane %v72, 1
    %v108 = vmul.f32 %v101, %v107
    %v109 = vmul.f32 %v105, %v107
    %v110 = vadd.f32 %v97, %v108
    %v111 = vadd.f32 %v98, %v109
    %112 = vset.pattern.permute.xlu0 2
    %113 = vperm.xlu0 %112, %v74
    %v114 = vpop.permute.xlu0 %113
    %116 = vset.pattern.permute.xlu0 2
    %117 = vperm.xlu0 %116, %v75
    %v118 = vpop.permute.xlu0 %117
    %v120 = vperm.slane %v72, 2
    %v121 = vmul.f32 %v114, %v120
    %v122 = vmul.f32 %v118, %v120
    %v123 = vadd.f32 %v110, %v121
    %v124 = vadd.f32 %v111, %v122
    %v125 = vxor.u32 %v123, 2147483648
    %v126 = vxor.u32 %v124, 2147483648
    %v127 = vmul.f32 %v125, 1.442695
    %v128 = vpow.pop %v127
    %v129 = vmul.f32 %v126, 1.442695
    %v130 = vpow.pop %v129
    %v131 = vadd.f32 %v128, 1.0
    %v132 = vadd.f32 %v130, 1.0
    %v133 = vrcp.pop %v131
    %v134 = vmul.f32 %v131, %v133
    %v135 = vsub.f32 1.0, %v134
    %v136 = vmul.f32 %v133, %v135
    %v137 = vadd.f32 %v133, %v136
    %vm138 = vweird.f32 %v131
    %vm139 = vweird.f32 %v133
    %vm140 = vmor %vm138, %vm139
    %v141 = vsel %vm140, %v133, %v137
    %v142 = vand.u32 2147483647, %v131
    %vm143 = vcmp.eq.f32.partialorder %v142, 8.507059e+37
    %v144 = vand.u32 %v131, 2147483648
    %v145 = vor.u32 1.1754944e-38, %v144
    %v146 = vsel %vm143, %v145, %v141
    %v147 = vmul.f32 1.0, %v146
    %v148 = vrcp.pop %v132
    %v149 = vmul.f32 %v132, %v148
    %v150 = vsub.f32 1.0, %v149
    %v151 = vmul.f32 %v148, %v150
    %v152 = vadd.f32 %v148, %v151
    %vm153 = vweird.f32 %v132
    %vm154 = vweird.f32 %v148
    %vm155 = vmor %vm153, %vm154
    %v156 = vsel %vm155, %v148, %v152
    %v157 = vand.u32 2147483647, %v132
    %vm158 = vcmp.eq.f32.partialorder %v157, 8.507059e+37
    %v159 = vand.u32 %v132, 2147483648
    %v160 = vor.u32 1.1754944e-38, %v159
    %v161 = vsel %vm158, %v160, %v156
    %v162 = vmul.f32 1.0, %v161
    %s163 = scalar_lea.vmem [#allocation3], 32
    %v164 = vld [vmem:[%s163] sm:$0xff]
    %v165 = vld [vmem:[%s163 + $0x8] sm:$0x1]
    %167 = vset.pattern.permute.xlu0 0
    %168 = vperm.xlu0 %167, %v164
    %v169 = vpop.permute.xlu0 %168
    %172 = vset.pattern.permute.xlu0 0
    %173 = vperm.xlu0 %172, %v165
    %v174 = vpop.permute.xlu0 %173
    %v176 = vperm.slane %v147, 0
    %v177 = vmul.f32 %v169, %v176
    %v178 = vmul.f32 %v174, %v176
    %179 = vset.pattern.permute.xlu0 9
    %180 = vperm.xlu0 %179, %v164
    %v181 = vpop.permute.xlu0 %180
    %183 = vset.pattern.permute.xlu0 9
    %184 = vperm.xlu0 %183, %v165
    %v185 = vpop.permute.xlu0 %184
    %v187 = vadd.f32 %v181, %v177
    %v188 = vadd.f32 %v185, %v178
    %189 = vset.pattern.permute.xlu0 1
    %190 = vperm.xlu0 %189, %v164
    %v191 = vpop.permute.xlu0 %190
    %193 = vset.pattern.permute.xlu0 1
    %194 = vperm.xlu0 %193, %v165
    %v195 = vpop.permute.xlu0 %194
    %v197 = vperm.slane %v147, 1
    %v198 = vmul.f32 %v191, %v197
    %v199 = vmul.f32 %v195, %v197
    %v200 = vadd.f32 %v187, %v198
    %v201 = vadd.f32 %v188, %v199
    %202 = vset.pattern.permute.xlu0 2
    %203 = vperm.xlu0 %202, %v164
    %v204 = vpop.permute.xlu0 %203
    %206 = vset.pattern.permute.xlu0 2
    %207 = vperm.xlu0 %206, %v165
    %v208 = vpop.permute.xlu0 %207
    %v210 = vperm.slane %v147, 2
    %v211 = vmul.f32 %v204, %v210
    %v212 = vmul.f32 %v208, %v210
    %v213 = vadd.f32 %v200, %v211
    %v214 = vadd.f32 %v201, %v212
    %215 = vset.pattern.permute.xlu0 3
    %216 = vperm.xlu0 %215, %v164
    %v217 = vpop.permute.xlu0 %216
    %219 = vset.pattern.permute.xlu0 3
    %220 = vperm.xlu0 %219, %v165
    %v221 = vpop.permute.xlu0 %220
    %v223 = vperm.slane %v147, 3
    %v224 = vmul.f32 %v217, %v223
    %v225 = vmul.f32 %v221, %v223
    %v226 = vadd.f32 %v213, %v224
    %v227 = vadd.f32 %v214, %v225
    %228 = vset.pattern.permute.xlu0 4
    %229 = vperm.xlu0 %228, %v164
    %v230 = vpop.permute.xlu0 %229
    %232 = vset.pattern.permute.xlu0 4
    %233 = vperm.xlu0 %232, %v165
    %v234 = vpop.permute.xlu0 %233
    %v236 = vperm.slane %v147, 4
    %v237 = vmul.f32 %v230, %v236
    %v238 = vmul.f32 %v234, %v236
    %v239 = vadd.f32 %v226, %v237
    %v240 = vadd.f32 %v227, %v238
    %241 = vset.pattern.permute.xlu0 5
    %242 = vperm.xlu0 %241, %v164
    %v243 = vpop.permute.xlu0 %242
    %245 = vset.pattern.permute.xlu0 5
    %246 = vperm.xlu0 %245, %v165
    %v247 = vpop.permute.xlu0 %246
    %v249 = vperm.slane %v147, 5
    %v250 = vmul.f32 %v243, %v249
    %v251 = vmul.f32 %v247, %v249
    %v252 = vadd.f32 %v239, %v250
    %v253 = vadd.f32 %v240, %v251
    %254 = vset.pattern.permute.xlu0 6
    %255 = vperm.xlu0 %254, %v164
    %v256 = vpop.permute.xlu0 %255
    %258 = vset.pattern.permute.xlu0 6
    %259 = vperm.xlu0 %258, %v165
    %v260 = vpop.permute.xlu0 %259
    %v262 = vperm.slane %v147, 6
    %v263 = vmul.f32 %v256, %v262
    %v264 = vmul.f32 %v260, %v262
    %v265 = vadd.f32 %v252, %v263
    %v266 = vadd.f32 %v253, %v264
    %267 = vset.pattern.permute.xlu0 7
    %268 = vperm.xlu0 %267, %v164
    %v269 = vpop.permute.xlu0 %268
    %271 = vset.pattern.permute.xlu0 7
    %272 = vperm.xlu0 %271, %v165
    %v273 = vpop.permute.xlu0 %272
    %v275 = vperm.slane %v147, 7
    %v276 = vmul.f32 %v269, %v275
    %v277 = vmul.f32 %v273, %v275
    %v278 = vadd.f32 %v265, %v276
    %v279 = vadd.f32 %v266, %v277
    %280 = vset.pattern.permute.xlu0 8
    %281 = vperm.xlu0 %280, %v164
    %v282 = vpop.permute.xlu0 %281
    %284 = vset.pattern.permute.xlu0 8
    %285 = vperm.xlu0 %284, %v165
    %v286 = vpop.permute.xlu0 %285
    %v288 = vperm.slane %v162, 0
    %v289 = vmul.f32 %v282, %v288
    %v290 = vmul.f32 %v286, %v288
    %v291 = vadd.f32 %v278, %v289
    %v292 = vadd.f32 %v279, %v290
    %v293 = vxor.u32 %v291, 2147483648
    %v294 = vxor.u32 %v292, 2147483648
    %v295 = vmul.f32 %v293, 1.442695
    %v296 = vpow.pop %v295
    %v297 = vmul.f32 %v294, 1.442695
    %v298 = vpow.pop %v297
    %v299 = vadd.f32 %v296, 1.0
    %v300 = vadd.f32 %v298, 1.0
    %v301 = vrcp.pop %v299
    %v302 = vmul.f32 %v299, %v301
    %v303 = vsub.f32 1.0, %v302
    %v304 = vmul.f32 %v301, %v303
    %v305 = vadd.f32 %v301, %v304
    %vm306 = vweird.f32 %v299
    %vm307 = vweird.f32 %v301
    %vm308 = vmor %vm306, %vm307
    %v309 = vsel %vm308, %v301, %v305
    %v310 = vand.u32 2147483647, %v299
    %vm311 = vcmp.eq.f32.partialorder %v310, 8.507059e+37
    %v312 = vand.u32 %v299, 2147483648
    %v313 = vor.u32 1.1754944e-38, %v312
    %v314 = vsel %vm311, %v313, %v309
    %v315 = vmul.f32 1.0, %v314
    %v316 = vrcp.pop %v300
    %v317 = vmul.f32 %v300, %v316
    %v318 = vsub.f32 1.0, %v317
    %v319 = vmul.f32 %v316, %v318
    %v320 = vadd.f32 %v316, %v319
    %vm321 = vweird.f32 %v300
    %vm322 = vweird.f32 %v316
    %vm323 = vmor %vm321, %vm322
    %v324 = vsel %vm323, %v316, %v320
    %v325 = vand.u32 2147483647, %v300
    %vm326 = vcmp.eq.f32.partialorder %v325, 8.507059e+37
    %v327 = vand.u32 %v300, 2147483648
    %v328 = vor.u32 1.1754944e-38, %v327
    %v329 = vsel %vm326, %v328, %v324
    %v330 = vmul.f32 1.0, %v329
    %s331 = scalar_lea.vmem [#allocation3], 48
    %v332 = vld [vmem:[%s331] sm:$0x7]
    %334 = vset.pattern.permute.xlu0 0
    %335 = vperm.xlu0 %334, %v332
    %v336 = vpop.permute.xlu0 %335
    %v338 = vperm.slane %v315, 0
    %v339 = vmul.f32 %v336, %v338
    %340 = vset.pattern.permute.xlu0 9
    %341 = vperm.xlu0 %340, %v332
    %v342 = vpop.permute.xlu0 %341
    %v344 = vadd.f32 %v342, %v339
    %345 = vset.pattern.permute.xlu0 1
    %346 = vperm.xlu0 %345, %v332
    %v347 = vpop.permute.xlu0 %346
    %v349 = vperm.slane %v315, 1
    %v350 = vmul.f32 %v347, %v349
    %v351 = vadd.f32 %v344, %v350
    %352 = vset.pattern.permute.xlu0 2
    %353 = vperm.xlu0 %352, %v332
    %v354 = vpop.permute.xlu0 %353
    %v356 = vperm.slane %v315, 2
    %v357 = vmul.f32 %v354, %v356
    %v358 = vadd.f32 %v351, %v357
    %359 = vset.pattern.permute.xlu0 3
    %360 = vperm.xlu0 %359, %v332
    %v361 = vpop.permute.xlu0 %360
    %v363 = vperm.slane %v315, 3
    %v364 = vmul.f32 %v361, %v363
    %v365 = vadd.f32 %v358, %v364
    %366 = vset.pattern.permute.xlu0 4
    %367 = vperm.xlu0 %366, %v332
    %v368 = vpop.permute.xlu0 %367
    %v370 = vperm.slane %v315, 4
    %v371 = vmul.f32 %v368, %v370
    %v372 = vadd.f32 %v365, %v371
    %373 = vset.pattern.permute.xlu0 5
    %374 = vperm.xlu0 %373, %v332
    %v375 = vpop.permute.xlu0 %374
    %v377 = vperm.slane %v315, 5
    %v378 = vmul.f32 %v375, %v377
    %v379 = vadd.f32 %v372, %v378
    %380 = vset.pattern.permute.xlu0 6
    %381 = vperm.xlu0 %380, %v332
    %v382 = vpop.permute.xlu0 %381
    %v384 = vperm.slane %v315, 6
    %v385 = vmul.f32 %v382, %v384
    %v386 = vadd.f32 %v379, %v385
    %387 = vset.pattern.permute.xlu0 7
    %388 = vperm.xlu0 %387, %v332
    %v389 = vpop.permute.xlu0 %388
    %v391 = vperm.slane %v315, 7
    %v392 = vmul.f32 %v389, %v391
    %v393 = vadd.f32 %v386, %v392
    %394 = vset.pattern.permute.xlu0 8
    %395 = vperm.xlu0 %394, %v332
    %v396 = vpop.permute.xlu0 %395
    %v398 = vperm.slane %v330, 0
    %v399 = vmul.f32 %v396, %v398
    %v400 = vadd.f32 %v393, %v399
    %v401 = vxor.u32 %v400, 2147483648
    %v402 = vmul.f32 %v401, 1.442695
    %v403 = vpow.pop %v402
    %v404 = vadd.f32 %v403, 1.0
    %v405 = vrcp.pop %v404
    %v406 = vmul.f32 %v404, %v405
    %v407 = vsub.f32 1.0, %v406
    %v408 = vmul.f32 %v405, %v407
    %v409 = vadd.f32 %v405, %v408
    %vm410 = vweird.f32 %v404
    %vm411 = vweird.f32 %v405
    %vm412 = vmor %vm410, %vm411
    %v413 = vsel %vm412, %v405, %v409
    %v414 = vand.u32 2147483647, %v404
    %vm415 = vcmp.eq.f32.partialorder %v414, 8.507059e+37
    %v416 = vand.u32 %v404, 2147483648
    %v417 = vor.u32 1.1754944e-38, %v416
    %v418 = vsel %vm415, %v417, %v413
    %v419 = vmul.f32 1.0, %v418
    %s420 = scalar_lea.vmem [#allocation3], 64
    %v421 = vld [vmem:[%s420] sm:$0x1]
    %423 = vset.pattern.permute.xlu0 0
    %424 = vperm.xlu0 %423, %v421
    %v425 = vpop.permute.xlu0 %424
    %v427 = vmul.f32 %v425, %v419
    %428 = vset.pattern.permute.xlu0 3
    %429 = vperm.xlu0 %428, %v421
    %v430 = vpop.permute.xlu0 %429
    %v432 = vadd.f32 %v430, %v427
    %433 = vset.pattern.permute.xlu0 1
    %434 = vperm.xlu0 %433, %v421
    %v435 = vpop.permute.xlu0 %434
    %v438 = vrot.slane %v419, 1
    %v440 = vmul.f32 %v435, %v438
    %v441 = vadd.f32 %v432, %v440
    %442 = vset.pattern.permute.xlu0 2
    %443 = vperm.xlu0 %442, %v421
    %v444 = vpop.permute.xlu0 %443
    %v446 = vrot.slane %v419, 2
    %v448 = vmul.f32 %v444, %v446
    %v449 = vadd.f32 %v441, %v448
    %v450 = vstv %s32
    %v451 = vadd.f32 %v449, %v450
    %452 = vst [vmem:[#allocation6] sm:$0x1] %v451
    // Predicated region
    $region18: #{_net_forward_padded.1} parent=1 // pred_check
      _
    $region19: #{_net_forward_padded.1} parent=1 // pred_check_branch
      %454 = sbr.rel (0) target = $region21
    $region20: #{_net_forward_padded.1} parent=1 // pred_region
      %456 = vsyncadd [#allocation5], 0
      %s458 = sshll.u32 [#allocation6], 4
      %s459 = int_to_ptr.vmem [resolvable:$true] %s458
      %s460 = sshll.u32 %s3, 4
      %s461 = int_to_ptr.hbm [resolvable:$true] %s460
      %463 = dma.vmem_to_hbm [thread:$0]  %s459, 16, %s461, [#allocation5]
    $region21: #{_net_forward_padded.1} parent=1 // pred_fallthru
      _
    // Predicated region
    $region22: #{_net_forward_padded.1} parent=1 // pred_check
      _
    $region23: #{_net_forward_padded.1} parent=1 // pred_check_branch
      %465 = sbr.rel (0) target = $region25
    $region24: #{_net_forward_padded.1} parent=1 // pred_region
      %467 = dma.done [#allocation5], 16
    $region25: #{_net_forward_padded.1} parent=1 // pred_fallthru
      _
    %468 = vsyncpa [#allocation4], 1
    %469 = vsyncpa [#allocation5], 1

</llo_original>
